<compile_context>
chip_gen: v6e
topology: v6e:2x2x1
jax: 0.10.0
libtpu: 0.0.40
codegen_flags: <defaults>
</compile_context>

<pallas_src>
import jax
import jax.numpy as jnp
from jax.experimental import pallas as pl
from jax.experimental.pallas import tpu as pltpu


def bert_tagger_kernel(x_ref, w_ref, b_ref, logits_ref, tags_ref):
    # x_ref:      (tile_m, H)   input rows (f32 or bf16)
    # w_ref:      (H, T)        classifier weight (transposed), grid-constant
    # b_ref:      (1, T)        classifier bias (f32), grid-constant
    # logits_ref: (tile_m, T)   output logits (f32)
    # tags_ref:   (1, tile_m)   output argmax indices (int32), lane-dense
    x = x_ref[...]
    w = w_ref[...]
    b = b_ref[...]

    # Linear: x @ W^T + b  (MXU matmul, f32 accumulation regardless of x dtype).
    logits = jnp.dot(x, w, preferred_element_type=jnp.float32) + b
    logits_ref[...] = logits.astype(logits_ref.dtype)

    # argmax over the tag axis (first occurrence on ties, matching jnp/torch).
    num_tags = logits.shape[-1]
    row_max = jnp.max(logits, axis=-1, keepdims=True)
    col_ids = jax.lax.broadcasted_iota(jnp.int32, logits.shape, 1)
    idx = jnp.min(
        jnp.where(logits == row_max, col_ids, jnp.int32(num_tags)),
        axis=-1,
    )  # (tile_m,)
    # Clamp keeps the index in-range even for pathological all-NaN rows
    # (torch would return an in-range index there too).
    idx = jnp.minimum(idx, jnp.int32(num_tags - 1))
    # Store lane-dense: rows of this tile sit on the 128-lane axis.
    tags_ref[...] = idx[None, :].astype(tags_ref.dtype)


def _choose_tile(M, tile_m_cap):
    """Pick the row-tile size.

    - M < 512: a single full-extent block (pipelining cannot help; a
      full-dim block shape is always legal regardless of (8,128) rules).
    - otherwise: a multiple of 128 rows, capped at `tile_m_cap`, and also
      capped so the grid has >= ~4 steps (double-buffer overlap + work for
      both v7x TensorCores).  Never exceeds M, so no padding is needed.
    """
    cap = max(128, (tile_m_cap // 128) * 128)
    if M < 512:
        return M
    return min(cap, max(128, ((M // 4) // 128) * 128))


def bert_tagger(bert_output, weight, bias, *, tile_m=2048):
    """bert_output: (B, S, H) f32 or bf16; weight: (T, H); bias: (T,).
    Returns (logits (B, S, T) f32, tags (B, S) int32)."""
    B, S, H = bert_output.shape
    T = weight.shape[0]
    M = B * S

    tile = _choose_tile(M, tile_m)
    grid = pl.cdiv(M, tile)

    x = bert_output.reshape(M, H)          # free reshape, no copy
    w_t = jnp.transpose(weight)            # (H, T): hidden on the lane axis
    if x.dtype != jnp.float32:
        # bf16 activations -> bf16 weights so the MXU runs bf16-native.
        w_t = w_t.astype(x.dtype)
    b2 = bias.reshape(1, T).astype(jnp.float32)

    x_bytes = x.dtype.itemsize
    cost = pl.CostEstimate(
        flops=2 * M * H * T,
        transcendentals=0,
        bytes_accessed=(x_bytes * M * H + x_bytes * H * T + 4 * T)  # reads
        + 4 * M * T + 4 * M,                                        # writes
    )

    # NOTE: w_t / b2 have constant index_maps; Pallas keeps them resident and
    # their double-buffer cost is negligible.  VMEM peak at tile=2048, H=768:
    # x 2*6 MiB + logits (lane-padded to 128) 2*1 MiB + weights/bias < 1 MiB,
    # so the 32 MiB scoped budget below is safe on v5e/v6e/v7x alike.
    logits, tags = pl.pallas_call(
        bert_tagger_kernel,
        out_shape=(
            jax.ShapeDtypeStruct((M, T), jnp.float32),
            jax.ShapeDtypeStruct((1, M), jnp.int32),
        ),
        grid_spec=pltpu.PrefetchScalarGridSpec(
            num_scalar_prefetch=0,
            grid=(grid,),
            in_specs=[
                pl.BlockSpec((tile, H), lambda i: (i, 0)),
                pl.BlockSpec((H, T), lambda i: (0, 0)),
                pl.BlockSpec((1, T), lambda i: (0, 0)),
            ],
            out_specs=[
                pl.BlockSpec((tile, T), lambda i: (i, 0)),
                pl.BlockSpec((1, tile), lambda i: (0, i)),
            ],
        ),
        compiler_params=pltpu.CompilerParams(
            dimension_semantics=("parallel",),
            vmem_limit_bytes=32 * 1024 * 1024,
        ),
        cost_estimate=cost,
    )(x, w_t, b2)

    logits = logits.reshape(B, S, T)
    tags = tags.reshape(B, S)
    # TODO(synk): PyTorch returns int64 tags; int32 is value-identical here.
    return logits, tags


if __name__ == "__main__":
    # Small shapes consistent with the module's forward:
    # bert_output: (batch=2, seq=8, hidden=32); classifier: 32 -> 8 tags.
    B, S, H, T = 2, 8, 32, 8

    key = jax.random.PRNGKey(0)
    k_x, k_w, k_b = jax.random.split(key, 3)

    bert_output = jax.random.normal(k_x, (B, S, H), dtype=jnp.float32)
    # Deterministic parameter init (same shapes as nn.Linear(H, T)).
    weight = jax.random.normal(k_w, (T, H), dtype=jnp.float32) * 0.05
    bias = jax.random.normal(k_b, (T,), dtype=jnp.float32) * 0.05

    logits, tags = bert_tagger(bert_output, weight, bias)
    jax.block_until_ready((logits, tags))

    # Reference check in plain JAX.
    ref_logits = jnp.einsum("bsh,th->bst", bert_output, weight) + bias
    ref_tags = jnp.argmax(ref_logits, axis=2).astype(jnp.int32)
    assert logits.shape == (B, S, T) and tags.shape == (B, S)
    assert jnp.allclose(logits, ref_logits, atol=1e-5, rtol=1e-5)
    assert jnp.array_equal(tags, ref_tags)

    print("KERNEL_OK")
</pallas_src>

<mosaic_0001>
module attributes {stable_mosaic.version = 11 : i64} {
  func.func @bert_tagger_kernel(%arg0: i32, %arg1: memref<16x32xf32, #tpu.memory_space<vmem>>, %arg2: memref<32x8xf32, #tpu.memory_space<vmem>>, %arg3: memref<1x8xf32, #tpu.memory_space<vmem>>, %arg4: memref<16x8xf32, #tpu.memory_space<vmem>>, %arg5: memref<1x16xi32, #tpu.memory_space<vmem>>) attributes {dimension_semantics = [#tpu.dimension_semantics<parallel>], iteration_bounds = array<i64: 1>, scalar_prefetch = 0 : i64, scratch_operands = 0 : i64, tpu.core_type = #tpu.core_type<tc>, window_params = [{transform_indices = @transform_0, window_bounds = array<i64: 16, 32>}, {pipeline_mode = #tpu.pipeline_mode<synchronous>, transform_indices = @transform_1, window_bounds = array<i64: 32, 8>}, {pipeline_mode = #tpu.pipeline_mode<synchronous>, transform_indices = @transform_2, window_bounds = array<i64: 1, 8>}, {transform_indices = @transform_3, window_bounds = array<i64: 16, 8>}, {transform_indices = @transform_4, window_bounds = array<i64: 1, 16>}]} {
    %c0 = arith.constant 0 : index
    %c0_0 = arith.constant 0 : index
    %0 = vector.load %arg1[%c0, %c0_0] : memref<16x32xf32, #tpu.memory_space<vmem>>, vector<16x32xf32>
    %c0_1 = arith.constant 0 : index
    %c0_2 = arith.constant 0 : index
    %1 = vector.load %arg2[%c0_1, %c0_2] : memref<32x8xf32, #tpu.memory_space<vmem>>, vector<32x8xf32>
    %c0_3 = arith.constant 0 : index
    %c0_4 = arith.constant 0 : index
    %2 = vector.load %arg3[%c0_3, %c0_4] : memref<1x8xf32, #tpu.memory_space<vmem>>, vector<1x8xf32>
    %cst = arith.constant dense<0.000000e+00> : vector<16x8xf32>
    %3 = tpu.matmul %0, %1, %cst {dimension_numbers = #tpu.dot_dimension_numbers<[1], [0], [0], [1], [0, 0, 1, 1], [], []>} : vector<16x32xf32>, vector<32x8xf32>, vector<16x8xf32> -> vector<16x8xf32>
    %4 = vector.broadcast %2 : vector<1x8xf32> to vector<16x8xf32>
    %5 = arith.addf %3, %4 : vector<16x8xf32>
    %c0_5 = arith.constant 0 : index
    %c0_6 = arith.constant 0 : index
    %6 = vector.load %arg4[%c0_5, %c0_6] : memref<16x8xf32, #tpu.memory_space<vmem>>, vector<16x8xf32>
    tpu.vector_store %arg4[%c0_5, %c0_6], %5 {strides = array<i32>} : memref<16x8xf32, #tpu.memory_space<vmem>>, vector<16x8xf32>,
    %cst_7 = arith.constant dense<0xFF800000> : vector<16xf32>
    %7 = vector.multi_reduction <maximumf>, %5, %cst_7 [1] : vector<16x8xf32> to vector<16xf32>
    %8 = vector.shape_cast %7 : vector<16xf32> to vector<16x1xf32>
    %9 = tpu.iota {dimensions = array<i32: 1>} : vector<16x8xi32>
    %10 = vector.broadcast %8 : vector<16x1xf32> to vector<16x8xf32>
    %11 = arith.cmpf oeq, %5, %10 : vector<16x8xf32>
    %c8_i32 = arith.constant 8 : i32
    %12 = vector.broadcast %c8_i32 : i32 to vector<16x8xi32>
    %13 = arith.select %11, %9, %12 : vector<16x8xi1>, vector<16x8xi32>
    %cst_8 = arith.constant dense<2147483647> : vector<16xi32>
    %14 = vector.multi_reduction <minsi>, %13, %cst_8 [1] : vector<16x8xi32> to vector<16xi32>
    %c7_i32 = arith.constant 7 : i32
    %15 = vector.broadcast %c7_i32 : i32 to vector<16xi32>
    %16 = arith.minsi %14, %15 : vector<16xi32>
    %17 = vector.shape_cast %16 : vector<16xi32> to vector<1x16xi32>
    %c0_9 = arith.constant 0 : index
    %c0_10 = arith.constant 0 : index
    %18 = vector.load %arg5[%c0_9, %c0_10] : memref<1x16xi32, #tpu.memory_space<vmem>>, vector<1x16xi32>
    tpu.vector_store %arg5[%c0_9, %c0_10], %17 {strides = array<i32>} : memref<1x16xi32, #tpu.memory_space<vmem>>, vector<1x16xi32>,
    return
  }
  func.func @transform_0(%arg0: i32) -> (i32, i32) {
    %c0_i32 = arith.constant 0 : i32
    %c0_i32_0 = arith.constant 0 : i32
    return %arg0, %c0_i32 : i32, i32
  }
  func.func @transform_1(%arg0: i32) -> (i32, i32) {
    %c0_i32 = arith.constant 0 : i32
    %c0_i32_0 = arith.constant 0 : i32
    %c0_i32_1 = arith.constant 0 : i32
    return %c0_i32, %c0_i32_0 : i32, i32
  }
  func.func @transform_2(%arg0: i32) -> (i32, i32) {
    %c0_i32 = arith.constant 0 : i32
    %c0_i32_0 = arith.constant 0 : i32
    %c0_i32_1 = arith.constant 0 : i32
    return %c0_i32, %c0_i32_0 : i32, i32
  }
  func.func @transform_3(%arg0: i32) -> (i32, i32) {
    %c0_i32 = arith.constant 0 : i32
    %c0_i32_0 = arith.constant 0 : i32
    return %arg0, %c0_i32 : i32, i32
  }
  func.func @transform_4(%arg0: i32) -> (i32, i32) {
    %c0_i32 = arith.constant 0 : i32
    %c0_i32_0 = arith.constant 0 : i32
    return %c0_i32, %arg0 : i32, i32
  }
}

</mosaic_0001>

<llo_original>
// kernel: tpu_custom_call.1
$region0: #{tpu_custom_call.1}
  #allocation0 [shape = 'u32[]', space=smem, size = 0x4, offset = 0x4, fixed_abs, tag = 'smem constant byte address 0x4 - core index']
  #allocation1 [shape = 'u32[144,128]{1,0:T(1,128)}', space=vmem, size = 0x12000, scoped, tag = 'internal scratch']
  %s0 = inlined_call_operand.vmem [shape: f32[16,32], index: 0, kind: input, shape index: {}]
  %s1 = inlined_call_operand.vmem [shape: f32[32,8], index: 1, kind: input, shape index: {}]
  %s2 = inlined_call_operand.vmem [shape: f32[1,8], index: 2, kind: input, shape index: {}]
  %s3 = inlined_call_operand.vmem [shape: f32[16,8], index: 3, kind: output, shape index: {0}]
  %s4 = inlined_call_operand.hbm [shape: s32[1,16], index: 4, kind: output, shape index: {1}]
  %5 = xla_tuple %s3, %s4
  %s6 = sld [smem:[#allocation0]]
  $region30: #{tpu_custom_call.1} parent=0
    _
  %s8 = ssub.s32 1, %s6
  %s9 = scalar_select 0, %s8, %s6
  $region1: #{tpu_custom_call.1} parent=0
    #allocation2 [shape = 'u8[512]{0}', space=vmem, size = 0x400, scoped, tag = 'output window, operand 1, single buffered']
    #allocation3 [shape = 's32[1]{0}', space=sflag, size = 0x4, scoped, tag = 'scoped memory for tpu_custom_call.1']
    %10 = vsyncpa [#allocation3], 0
    // Predicated region
    $region2: #{tpu_custom_call.1} parent=1 // pred_check
      _
    $region3: #{tpu_custom_call.1} parent=1 // pred_check_branch
      %12 = sbr.rel (0) target = $region5
    $region4: #{tpu_custom_call.1} parent=1 // pred_region
      _
    $region5: #{tpu_custom_call.1} parent=1 // pred_fallthru
      _
    // Predicated region
    $region6: #{tpu_custom_call.1} parent=1 // pred_check
      _
    $region7: #{tpu_custom_call.1} parent=1 // pred_check_branch
      %14 = sbr.rel (0) target = $region9
    $region8: #{tpu_custom_call.1} parent=1 // pred_region
      _
    $region9: #{tpu_custom_call.1} parent=1 // pred_fallthru
      _
    // Predicated region
    $region10: #{tpu_custom_call.1} parent=1 // pred_check
      _
    $region11: #{tpu_custom_call.1} parent=1 // pred_check_branch
      %16 = sbr.rel (0) target = $region13
    $region12: #{tpu_custom_call.1} parent=1 // pred_region
      _
    $region13: #{tpu_custom_call.1} parent=1 // pred_fallthru
      _
    %v17 = vld [vmem:[%s0] sm:$0xff]
    %v18 = vld [vmem:[%s0 + $0x8] sm:$0xff]
    %v19 = vld [vmem:[%s1] sm:$0xff]
    %v20 = vld [vmem:[%s1 + $0x8] sm:$0xff]
    %v21 = vld [vmem:[%s1 + $0x10] sm:$0xff]
    %v22 = vld [vmem:[%s1 + $0x18] sm:$0xff]
    %v23 = vld [vmem:[%s2] sm:$0x1]
    %v25 = vlaneseq
    %v26 = vshrl.u32 %v25, 7
    %v27 = vsub.s32 0, %v26
    %v28 = vrot.slane %v23, %v27
    %vm30 = vcmask 261120
    %v32 = vsel %vm30, %v17, 0
    %v35 = vsel %vm30, %v18, 0
    %37 = vmatprep.subr.mxu0 0.0
    %38 = vmatpush1.msra.mxu0 0.0
    %39 = vmatprep.subr.mxu0 0.0
    %40 = vmatpush1.msra.mxu0 0.0
    %41 = vmatprep.subr.mxu0 0.0
    %42 = vmatpush1.msra.mxu0 0.0
    %43 = vmatprep.subr.mxu0 0.0
    %44 = vmatpush1.msra.mxu0 0.0
    %45 = vmatprep.subr.mxu0 0.0
    %46 = vmatpush1.msra.mxu0 0.0
    %47 = vmatprep.subr.mxu0 0.0
    %48 = vmatpush1.msra.mxu0 0.0
    %49 = vmatprep.subr.mxu0 0.0
    %50 = vmatpush1.msra.mxu0 0.0
    %51 = vmatprep.subr.mxu0 0.0
    %52 = vmatpush1.msra.mxu0 0.0
    %53 = vmatprep.subr.mxu0 0.0
    %54 = vmatpush1.msra.mxu0 0.0
    %55 = vmatprep.subr.mxu0 0.0
    %56 = vmatpush1.msra.mxu0 0.0
    %57 = vmatprep.subr.mxu0 0.0
    %58 = vmatpush1.msra.mxu0 0.0
    %59 = vmatprep.subr.mxu0 0.0
    %60 = vmatpush1.msra.mxu0 0.0
    %61 = vmatprep.subr.mxu0 0.0
    %62 = vmatpush1.msra.mxu0 %v22
    %63 = vmatprep.subr.mxu0 0.0
    %64 = vmatpush1.msra.mxu0 %v21
    %65 = vmatprep.subr.mxu0 0.0
    %66 = vmatpush1.msra.mxu0 %v20
    %67 = vmatprep.subr.mxu0 0.0
    %68 = vmatpush1.msra.mxu0 %v19
    %69 = vmatprep.subr.mxu0 0.0
    %70 = vmatpush2.msra.mxu0 0.0
    %71 = vmatprep.subr.mxu0 0.0
    %72 = vmatpush2.msra.mxu0 0.0
    %73 = vmatprep.subr.mxu0 0.0
    %74 = vmatpush2.msra.mxu0 0.0
    %75 = vmatprep.subr.mxu0 0.0
    %76 = vmatpush2.msra.mxu0 0.0
    %77 = vmatprep.subr.mxu0 0.0
    %78 = vmatpush2.msra.mxu0 0.0
    %79 = vmatprep.subr.mxu0 0.0
    %80 = vmatpush2.msra.mxu0 0.0
    %81 = vmatprep.subr.mxu0 0.0
    %82 = vmatpush2.msra.mxu0 0.0
    %83 = vmatprep.subr.mxu0 0.0
    %84 = vmatpush2.msra.mxu0 0.0
    %85 = vmatprep.subr.mxu0 0.0
    %86 = vmatpush2.msra.mxu0 0.0
    %87 = vmatprep.subr.mxu0 0.0
    %88 = vmatpush2.msra.mxu0 0.0
    %89 = vmatprep.subr.mxu0 0.0
    %90 = vmatpush2.msra.mxu0 0.0
    %91 = vmatprep.subr.mxu0 0.0
    %92 = vmatpush2.msra.mxu0 0.0
    %93 = vmatprep.subr.mxu0 0.0
    %94 = vmatpush2.msra.mxu0 0.0
    %95 = vmatprep.subr.mxu0 0.0
    %96 = vmatpush2.msra.mxu0 0.0
    %97 = vmatprep.subr.mxu0 0.0
    %98 = vmatpush2.msra.mxu0 0.0
    %99 = vmatprep.subr.mxu0 0.0
    %100 = vmatpush2.msra.mxu0 0.0
    %101 = vmatprep.mubr.f32.mxu0 0.0
    %102 = vmatmul.mubr.f32.gmra.mxu0 %v32
    %v103 = vpop.f32.mrf.mxu0
    %v104 = vadd.f32 %v28, %v103
    %v105 = vpop.f32.mrf.mxu0
    %106 = vmatprep.mubr.f32.mxu0 0.0
    %107 = vmatmul.mubr.f32.gmra.mxu0 %v35
    %v108 = vpop.f32.mrf.mxu0
    %v109 = vadd.f32 %v28, %v108
    %v110 = vpop.f32.mrf.mxu0
    %111 = vdwg.mxu0
    %vm112 = vcmask 64512
    %113 = vst.msk [vmem:[%s3] sm:$0xff] %vm112, %v104
    %114 = vst.msk [vmem:[%s3 + $0x8] sm:$0xff] %vm112, %v109
    %v115 = vsel %vm112, %v104, -inf
    %116 = vmax.xlane.f32.xlu0 %v115
    %v117 = vpop.xlane.xlu0 %116
    %v118 = vsel %vm112, %v109, -inf
    %119 = vmax.xlane.f32.xlu0 %v118
    %v120 = vpop.xlane.xlu0 %119
    %v121 = vlaneseq
    %v122 = vand.u32 %v121, 127
    %vm123 = vcmp.eq.f32.partialorder %v104, %v117
    %vm124 = vcmp.eq.f32.partialorder %v109, %v120
    %v125 = vsel %vm123, %v122, 8
    %v126 = vsel %vm124, %v122, 8
    %v127 = vsel %vm112, %v125, 2147483647
    %v128 = vand.u32 %v127, 65535
    %v129 = vshra.s32 %v127, 16
    %v130 = vcvt.s32.f32 %v128
    %v131 = vcvt.s32.f32 %v129
    %132 = vmin.xlane.f32.xlu0 %v131
    %v133 = vpop.xlane.xlu0 %132
    %vm134 = vcmp.eq.f32.partialorder %v131, %v133
    %v135 = vsel %vm134, %v130, inf
    %136 = vmin.xlane.f32.xlu0 %v135
    %v137 = vpop.xlane.xlu0 %136
    %v138 = vcvt.f32.s32 %v137
    %v139 = vcvt.f32.s32 %v133
    %v140 = vshll.u32 %v139, 16
    %v141 = vadd.s32 %v140, %v138
    %v142 = vsel %vm112, %v126, 2147483647
    %v143 = vand.u32 %v142, 65535
    %v144 = vshra.s32 %v142, 16
    %v145 = vcvt.s32.f32 %v143
    %v146 = vcvt.s32.f32 %v144
    %147 = vmin.xlane.f32.xlu0 %v146
    %v148 = vpop.xlane.xlu0 %147
    %vm149 = vcmp.eq.f32.partialorder %v146, %v148
    %v150 = vsel %vm149, %v145, inf
    %151 = vmin.xlane.f32.xlu0 %v150
    %v152 = vpop.xlane.xlu0 %151
    %v153 = vcvt.f32.s32 %v152
    %v154 = vcvt.f32.s32 %v148
    %v155 = vshll.u32 %v154, 16
    %v156 = vadd.s32 %v155, %v153
    %vm157 = vcmp.lt.s32.totalorder %v141, 7
    %v158 = vsel %vm157, %v141, 7
    %vm159 = vcmp.lt.s32.totalorder %v156, 7
    %v160 = vsel %vm159, %v156, 7
    %v161 = vlaneseq
    %v162 = vshrl.u32 %v161, 7
    %v163 = vsub.s32 %v122, %v162
    %v164 = vrot.slane %v158, %v163
    %v165 = vadd.s32 %v122, 4294967288
    %v166 = vlaneseq
    %v167 = vshrl.u32 %v166, 7
    %v168 = vsub.s32 %v165, %v167
    %v169 = vrot.slane %v160, %v168
    %vm170 = vcmask 130112
    %v171 = vsel %vm170, %v169, %v164
    %vm172 = vcmask 122880
    %173 = vst.msk [vmem:[#allocation2] sm:$0x1] %vm172, %v171
    // Predicated region
    $region14: #{tpu_custom_call.1} parent=1 // pred_check
      _
    $region15: #{tpu_custom_call.1} parent=1 // pred_check_branch
      %175 = sbr.rel (0) target = $region17
    $region16: #{tpu_custom_call.1} parent=1 // pred_region
      _
    $region17: #{tpu_custom_call.1} parent=1 // pred_fallthru
      _
    // Predicated region
    $region18: #{tpu_custom_call.1} parent=1 // pred_check
      _
    $region19: #{tpu_custom_call.1} parent=1 // pred_check_branch
      %177 = sbr.rel (0) target = $region21
    $region20: #{tpu_custom_call.1} parent=1 // pred_region
      %s179 = ssub.s32 16, 16
      %180 = vsyncadd [#allocation3], %s179
      %s182 = sshll.u32 [#allocation2], 4
      %s183 = int_to_ptr.vmem [resolvable:$true] %s182
      %185 = dma.vmem_to_hbm [thread:$0]  %s183, 16, %s4, [#allocation3]
    $region21: #{tpu_custom_call.1} parent=1 // pred_fallthru
      _
    // Predicated region
    $region22: #{tpu_custom_call.1} parent=1 // pred_check
      _
    $region23: #{tpu_custom_call.1} parent=1 // pred_check_branch
      %187 = sbr.rel (0) target = $region25
    $region24: #{tpu_custom_call.1} parent=1 // pred_region
      _
    $region25: #{tpu_custom_call.1} parent=1 // pred_fallthru
      _
    // Predicated region
    $region26: #{tpu_custom_call.1} parent=1 // pred_check
      _
    $region27: #{tpu_custom_call.1} parent=1 // pred_check_branch
      %189 = sbr.rel (0) target = $region29
    $region28: #{tpu_custom_call.1} parent=1 // pred_region
      %190 = dma.done [#allocation3], 16
    $region29: #{tpu_custom_call.1} parent=1 // pred_fallthru
      _
    %191 = vsyncpa [#allocation3], 1

</llo_original>
